<compile_context>
chip_gen: v7x
topology: tpu7x:2x2x1
jax: 0.10.0
libtpu: 0.0.40
codegen_flags: <defaults>
</compile_context>

<pallas_src>
import functools

import jax
import jax.numpy as jnp
from jax.experimental import pallas as pl
from jax.experimental.pallas import tpu as pltpu

EPS = 1e-5
_PAD_LOG = -1e9   # exp() underflows to 0.0, so padded voxels contribute nothing


def _combined_loss_kernel(logs_ref, yb_ref, ce_ref, dice_ref,
                          ce_acc, tp_acc, cs_acc, *, eps):
    t = pl.program_id(1)            # spatial-tile index (innermost grid axis)

    @pl.when(t == 0)
    def _():
        ce_acc[...] = jnp.zeros_like(ce_acc)
        tp_acc[...] = jnp.zeros_like(tp_acc)
        cs_acc[...] = jnp.zeros_like(cs_acc)

    logs = logs_ref[0].astype(jnp.float32)      # (C, TP) log-softmax
    labels = yb_ref[0]                          # (1, TP) int32 labels
    C = logs.shape[0]

    # one-hot via broadcast compare (no f32 one-hot materialized)
    ch_ids = jax.lax.broadcasted_iota(jnp.int32, (C, 1), 0)   # (C, 1)
    yb_oh = labels == ch_ids                                  # (C, TP) bool

    pred = jnp.exp(logs)                                      # softmax probs

    # --- cross-entropy partial: sum_{c,p} 1[label==c] * logs ----------------
    ce_acc[...] += jnp.sum(jnp.where(yb_oh, logs, 0.0), keepdims=True)  # (1,1)

    # --- dice partials:  fn + fp + 2*tp == count + sum(pred) ----------------
    tp_acc[...] += jnp.sum(jnp.where(yb_oh, pred, 0.0),
                           axis=-1, keepdims=True)                       # (C,1)
    cs_acc[...] += (jnp.sum(yb_oh.astype(jnp.float32), axis=-1, keepdims=True)
                    + jnp.sum(pred, axis=-1, keepdims=True))             # (C,1)

    # --- finalize this sample on its last spatial tile -----------------------
    @pl.when(t == pl.num_programs(1) - 1)
    def _():
        dice = (2.0 * tp_acc[...] + eps) / (cs_acc[...] + eps)           # (C,1)
        fg = jax.lax.broadcasted_iota(jnp.int32, (C, 1), 0) >= 1         # drop bg
        dice_sum = jnp.sum(jnp.where(fg, dice, 0.0), keepdims=True)      # (1,1)
        ce_ref[0] = jnp.broadcast_to(ce_acc[...], (1, 128))
        dice_ref[0] = jnp.broadcast_to(dice_sum, (1, 128))


def weighted_combined_loss(logs, yb, loss_weights=(1.0, 1.0), eps=EPS,
                           tile_p=32768):
    """logs: (N, C, H, W) log-softmax, yb: (N, 1, H, W) integer labels."""
    N, C, H, W = logs.shape
    assert yb.shape == (N, 1, H, W)
    P = H * W

    # keep bf16 inputs as bf16 (kernel is HBM-bandwidth bound); otherwise f32
    if logs.dtype not in (jnp.bfloat16, jnp.float32):
        logs = logs.astype(jnp.float32)
    logs_r = logs.reshape(N, C, P)
    yb_r = yb.reshape(N, 1, P).astype(jnp.int32)

    # lane-aligned spatial tile; pad P so it divides evenly
    TP = min(P, int(tile_p))
    TP = ((TP + 127) // 128) * 128
    PT = (P + TP - 1) // TP
    P_pad = PT * TP
    if P_pad != P:
        logs_r = jnp.pad(logs_r, ((0, 0), (0, 0), (0, P_pad - P)),
                         constant_values=_PAD_LOG)
        yb_r = jnp.pad(yb_r, ((0, 0), (0, 0), (0, P_pad - P)),
                       constant_values=-1)

    kernel = functools.partial(_combined_loss_kernel, eps=float(eps))

    ce_part, dice_part = pl.pallas_call(
        kernel,
        out_shape=(jax.ShapeDtypeStruct((N, 1, 128), jnp.float32),
                   jax.ShapeDtypeStruct((N, 1, 128), jnp.float32)),
        grid_spec=pltpu.PrefetchScalarGridSpec(
            num_scalar_prefetch=0,
            grid=(N, PT),
            in_specs=[
                pl.BlockSpec((1, C, TP), lambda n, t: (n, 0, t)),
                pl.BlockSpec((1, 1, TP), lambda n, t: (n, 0, t)),
            ],
            out_specs=[
                pl.BlockSpec((1, 1, 128), lambda n, t: (n, 0, 0)),
                pl.BlockSpec((1, 1, 128), lambda n, t: (n, 0, 0)),
            ],
            scratch_shapes=[
                pltpu.VMEM((1, 1), jnp.float32),   # per-sample CE partial
                pltpu.VMEM((C, 1), jnp.float32),   # per-channel tp
                pltpu.VMEM((C, 1), jnp.float32),   # per-channel count + sum(pred)
            ],
        ),
        compiler_params=pltpu.CompilerParams(
            dimension_semantics=("parallel", "arbitrary"),
            vmem_limit_bytes=32 * 1024 * 1024,
        ),
    )(logs_r, yb_r)

    w_ce, w_dice = float(loss_weights[0]), float(loss_weights[1])
    ce_sum = jnp.sum(ce_part[:, 0, 0])
    dice_sum = jnp.sum(dice_part[:, 0, 0])
    ce_loss = -ce_sum / jnp.float32(N * P)             # true voxel count (no pad)
    dice_loss = -dice_sum / jnp.float32(N * (C - 1))
    return w_ce * ce_loss + w_dice * dice_loss


def _reference(logs, yb, loss_weights=(1.0, 1.0), eps=EPS):
    """Pure-JAX reference of the PyTorch module (CE + soft dice)."""
    N, C, H, W = logs.shape
    yb_oh = (yb.astype(jnp.int32) ==
             jnp.arange(C).reshape(1, C, 1, 1)).astype(jnp.float32)
    logs = logs.astype(jnp.float32)
    ce = -jnp.mean(jnp.sum(yb_oh * logs, axis=1))
    pred = jnp.exp(logs)[:, 1:]
    y = yb_oh[:, 1:]
    dims = (2, 3)
    tp = jnp.sum(y * pred, dims)
    fn = jnp.sum(y * (1.0 - pred), dims)
    fp = jnp.sum((1.0 - y) * pred, dims)
    dice = (2.0 * tp + eps) / (2.0 * tp + fn + fp + eps)
    dl = -jnp.mean(dice)
    return loss_weights[0] * ce + loss_weights[1] * dl


if __name__ == "__main__":
    key = jax.random.PRNGKey(0)
    k1, k2 = jax.random.split(key)

    N, C, H, W = 2, 4, 16, 16
    logits = jax.random.normal(k1, (N, C, H, W), dtype=jnp.float32)
    logs = jax.nn.log_softmax(logits, axis=1)                  # log-softmax inputs
    yb = jax.random.randint(k2, (N, 1, H, W), 0, C, dtype=jnp.int32)

    loss = weighted_combined_loss(logs, yb, loss_weights=(1.0, 1.0))
    loss = jax.block_until_ready(loss)

    ref = _reference(logs, yb, loss_weights=(1.0, 1.0))
    assert jnp.allclose(loss, ref, atol=1e-5, rtol=1e-5), (loss, ref)

    print("KERNEL_OK")
</pallas_src>

<mosaic_0001>
module attributes {stable_mosaic.version = 11 : i64} {
  func.func @_combined_loss_kernel(%arg0: i32, %arg1: i32, %arg2: memref<1x4x256xf32, #tpu.memory_space<vmem>>, %arg3: memref<1x1x256xi32, #tpu.memory_space<vmem>>, %arg4: memref<1x1x128xf32, #tpu.memory_space<vmem>>, %arg5: memref<1x1x128xf32, #tpu.memory_space<vmem>>, %arg6: memref<1x1xf32, #tpu.memory_space<vmem>>, %arg7: memref<4x1xf32, #tpu.memory_space<vmem>>, %arg8: memref<4x1xf32, #tpu.memory_space<vmem>>) attributes {dimension_semantics = [#tpu.dimension_semantics<parallel>, #tpu.dimension_semantics<arbitrary>], iteration_bounds = array<i64: 2, 1>, scalar_prefetch = 0 : i64, scratch_operands = 3 : i64, tpu.core_type = #tpu.core_type<tc>, window_params = [{transform_indices = @transform_0, window_bounds = array<i64: 1, 4, 256>}, {transform_indices = @transform_1, window_bounds = array<i64: 1, 1, 256>}, {transform_indices = @transform_2, window_bounds = array<i64: 1, 1, 128>}, {transform_indices = @transform_3, window_bounds = array<i64: 1, 1, 128>}]} {
    %c0_i32 = arith.constant 0 : i32
    %0 = arith.cmpi eq, %arg1, %c0_i32 : i32
    %1 = arith.extui %0 : i1 to i32
    %c0_i32_0 = arith.constant 0 : i32
    %2 = arith.cmpi ne, %1, %c0_i32_0 : i32
    scf.if %2 {
      %cst_25 = arith.constant 0.000000e+00 : f32
      %42 = vector.broadcast %cst_25 : f32 to vector<1x1xf32>
      %c0_26 = arith.constant 0 : index
      %c0_27 = arith.constant 0 : index
      %43 = vector.load %arg6[%c0_26, %c0_27] : memref<1x1xf32, #tpu.memory_space<vmem>>, vector<1x1xf32>
      tpu.vector_store %arg6[%c0_26, %c0_27], %42 {strides = array<i32>} : memref<1x1xf32, #tpu.memory_space<vmem>>, vector<1x1xf32>,
      %cst_28 = arith.constant 0.000000e+00 : f32
      %44 = vector.broadcast %cst_28 : f32 to vector<4x1xf32>
      %c0_29 = arith.constant 0 : index
      %c0_30 = arith.constant 0 : index
      %45 = vector.load %arg7[%c0_29, %c0_30] : memref<4x1xf32, #tpu.memory_space<vmem>>, vector<4x1xf32>
      tpu.vector_store %arg7[%c0_29, %c0_30], %44 {strides = array<i32>} : memref<4x1xf32, #tpu.memory_space<vmem>>, vector<4x1xf32>,
      %cst_31 = arith.constant 0.000000e+00 : f32
      %46 = vector.broadcast %cst_31 : f32 to vector<4x1xf32>
      %c0_32 = arith.constant 0 : index
      %c0_33 = arith.constant 0 : index
      %47 = vector.load %arg8[%c0_32, %c0_33] : memref<4x1xf32, #tpu.memory_space<vmem>>, vector<4x1xf32>
      tpu.vector_store %arg8[%c0_32, %c0_33], %46 {strides = array<i32>} : memref<4x1xf32, #tpu.memory_space<vmem>>, vector<4x1xf32>,
    } else {
    }
    %c0 = arith.constant 0 : index
    %c0_1 = arith.constant 0 : index
    %c0_2 = arith.constant 0 : index
    %3 = vector.load %arg2[%c0, %c0_1, %c0_2] : memref<1x4x256xf32, #tpu.memory_space<vmem>>, vector<1x4x256xf32>
    %4 = vector.shape_cast %3 : vector<1x4x256xf32> to vector<4x256xf32>
    %c0_3 = arith.constant 0 : index
    %c0_4 = arith.constant 0 : index
    %c0_5 = arith.constant 0 : index
    %5 = vector.load %arg3[%c0_3, %c0_4, %c0_5] : memref<1x1x256xi32, #tpu.memory_space<vmem>>, vector<1x1x256xi32>
    %6 = vector.shape_cast %5 : vector<1x1x256xi32> to vector<1x256xi32>
    %7 = tpu.iota {dimensions = array<i32: 0>} : vector<4x1xi32>
    %8 = vector.broadcast %6 : vector<1x256xi32> to vector<4x256xi32>
    %9 = vector.broadcast %7 : vector<4x1xi32> to vector<4x256xi32>
    %10 = arith.cmpi eq, %8, %9 : vector<4x256xi32>
    %11 = math.exp %4 : vector<4x256xf32>
    %c0_6 = arith.constant 0 : index
    %c0_7 = arith.constant 0 : index
    %12 = vector.load %arg6[%c0_6, %c0_7] : memref<1x1xf32, #tpu.memory_space<vmem>>, vector<1x1xf32>
    %cst = arith.constant 0.000000e+00 : f32
    %13 = vector.broadcast %cst : f32 to vector<4x256xf32>
    %14 = arith.select %10, %4, %13 : vector<4x256xi1>, vector<4x256xf32>
    %15 = vector.shape_cast %14 : vector<4x256xf32> to vector<1x4x256xf32>
    %cst_8 = arith.constant dense<0.000000e+00> : vector<1xf32>
    %16 = vector.multi_reduction <add>, %15, %cst_8 [1, 2] : vector<1x4x256xf32> to vector<1xf32>
    %17 = vector.shape_cast %16 : vector<1xf32> to vector<1x1x1xf32>
    %18 = vector.extract %17[0, 0, 0] : f32 from vector<1x1x1xf32>
    %19 = vector.broadcast %18 : f32 to vector<1x1xf32>
    %20 = arith.addf %12, %19 : vector<1x1xf32>
    %c0_9 = arith.constant 0 : index
    %c0_10 = arith.constant 0 : index
    %21 = vector.load %arg6[%c0_9, %c0_10] : memref<1x1xf32, #tpu.memory_space<vmem>>, vector<1x1xf32>
    tpu.vector_store %arg6[%c0_9, %c0_10], %20 {strides = array<i32>} : memref<1x1xf32, #tpu.memory_space<vmem>>, vector<1x1xf32>,
    %c0_11 = arith.constant 0 : index
    %c0_12 = arith.constant 0 : index
    %22 = vector.load %arg7[%c0_11, %c0_12] : memref<4x1xf32, #tpu.memory_space<vmem>>, vector<4x1xf32>
    %cst_13 = arith.constant 0.000000e+00 : f32
    %23 = vector.broadcast %cst_13 : f32 to vector<4x256xf32>
    %24 = arith.select %10, %11, %23 : vector<4x256xi1>, vector<4x256xf32>
    %cst_14 = arith.constant dense<0.000000e+00> : vector<4xf32>
    %25 = vector.multi_reduction <add>, %24, %cst_14 [1] : vector<4x256xf32> to vector<4xf32>
    %26 = vector.shape_cast %25 : vector<4xf32> to vector<4x1xf32>
    %27 = arith.addf %22, %26 : vector<4x1xf32>
    %c0_15 = arith.constant 0 : index
    %c0_16 = arith.constant 0 : index
    %28 = vector.load %arg7[%c0_15, %c0_16] : memref<4x1xf32, #tpu.memory_space<vmem>>, vector<4x1xf32>
    tpu.vector_store %arg7[%c0_15, %c0_16], %27 {strides = array<i32>} : memref<4x1xf32, #tpu.memory_space<vmem>>, vector<4x1xf32>,
    %c0_17 = arith.constant 0 : index
    %c0_18 = arith.constant 0 : index
    %29 = vector.load %arg8[%c0_17, %c0_18] : memref<4x1xf32, #tpu.memory_space<vmem>>, vector<4x1xf32>
    %30 = arith.extui %10 : vector<4x256xi1> to vector<4x256xi32>
    %31 = arith.sitofp %30 : vector<4x256xi32> to vector<4x256xf32>
    %cst_19 = arith.constant dense<0.000000e+00> : vector<4xf32>
    %32 = vector.multi_reduction <add>, %31, %cst_19 [1] : vector<4x256xf32> to vector<4xf32>
    %33 = vector.shape_cast %32 : vector<4xf32> to vector<4x1xf32>
    %cst_20 = arith.constant dense<0.000000e+00> : vector<4xf32>
    %34 = vector.multi_reduction <add>, %11, %cst_20 [1] : vector<4x256xf32> to vector<4xf32>
    %35 = vector.shape_cast %34 : vector<4xf32> to vector<4x1xf32>
    %36 = arith.addf %33, %35 : vector<4x1xf32>
    %37 = arith.addf %29, %36 : vector<4x1xf32>
    %c0_21 = arith.constant 0 : index
    %c0_22 = arith.constant 0 : index
    %38 = vector.load %arg8[%c0_21, %c0_22] : memref<4x1xf32, #tpu.memory_space<vmem>>, vector<4x1xf32>
    tpu.vector_store %arg8[%c0_21, %c0_22], %37 {strides = array<i32>} : memref<4x1xf32, #tpu.memory_space<vmem>>, vector<4x1xf32>,
    %c0_i32_23 = arith.constant 0 : i32
    %39 = arith.cmpi eq, %arg1, %c0_i32_23 : i32
    %40 = arith.extui %39 : i1 to i32
    %c0_i32_24 = arith.constant 0 : i32
    %41 = arith.cmpi ne, %40, %c0_i32_24 : i32
    scf.if %41 {
      %c0_25 = arith.constant 0 : index
      %c0_26 = arith.constant 0 : index
      %42 = vector.load %arg7[%c0_25, %c0_26] : memref<4x1xf32, #tpu.memory_space<vmem>>, vector<4x1xf32>
      %cst_27 = arith.constant 2.000000e+00 : f32
      %43 = vector.broadcast %cst_27 : f32 to vector<4x1xf32>
      %44 = arith.mulf %43, %42 : vector<4x1xf32>
      %cst_28 = arith.constant 9.99999974E-6 : f32
      %45 = vector.broadcast %cst_28 : f32 to vector<4x1xf32>
      %46 = arith.addf %44, %45 : vector<4x1xf32>
      %c0_29 = arith.constant 0 : index
      %c0_30 = arith.constant 0 : index
      %47 = vector.load %arg8[%c0_29, %c0_30] : memref<4x1xf32, #tpu.memory_space<vmem>>, vector<4x1xf32>
      %cst_31 = arith.constant 9.99999974E-6 : f32
      %48 = vector.broadcast %cst_31 : f32 to vector<4x1xf32>
      %49 = arith.addf %47, %48 : vector<4x1xf32>
      %50 = arith.divf %46, %49 : vector<4x1xf32>
      %51 = tpu.iota {dimensions = array<i32: 0>} : vector<4x1xi32>
      %c1_i32 = arith.constant 1 : i32
      %52 = vector.broadcast %c1_i32 : i32 to vector<4x1xi32>
      %53 = arith.cmpi sge, %51, %52 : vector<4x1xi32>
      %cst_32 = arith.constant 0.000000e+00 : f32
      %54 = vector.broadcast %cst_32 : f32 to vector<4x1xf32>
      %55 = arith.select %53, %50, %54 : vector<4x1xi1>, vector<4x1xf32>
      %56 = vector.shape_cast %55 : vector<4x1xf32> to vector<1x4x1xf32>
      %cst_33 = arith.constant dense<0.000000e+00> : vector<1xf32>
      %57 = vector.multi_reduction <add>, %56, %cst_33 [1, 2] : vector<1x4x1xf32> to vector<1xf32>
      %58 = vector.shape_cast %57 : vector<1xf32> to vector<1x1x1xf32>
      %59 = vector.extract %58[0, 0, 0] : f32 from vector<1x1x1xf32>
      %60 = vector.broadcast %59 : f32 to vector<1x1xf32>
      %c0_34 = arith.constant 0 : index
      %c0_35 = arith.constant 0 : index
      %61 = vector.load %arg6[%c0_34, %c0_35] : memref<1x1xf32, #tpu.memory_space<vmem>>, vector<1x1xf32>
      %62 = vector.shape_cast %61 : vector<1x1xf32> to vector<1x1xf32>
      %63 = vector.broadcast %62 : vector<1x1xf32> to vector<1x128xf32>
      %c0_36 = arith.constant 0 : index
      %c0_37 = arith.constant 0 : index
      %c0_38 = arith.constant 0 : index
      %64 = vector.load %arg4[%c0_36, %c0_37, %c0_38] : memref<1x1x128xf32, #tpu.memory_space<vmem>>, vector<1x1x128xf32>
      %65 = vector.shape_cast %64 : vector<1x1x128xf32> to vector<1x128xf32>
      %66 = vector.shape_cast %63 : vector<1x128xf32> to vector<1x1x128xf32>
      tpu.vector_store %arg4[%c0_36, %c0_37, %c0_38], %66 {strides = array<i32>} : memref<1x1x128xf32, #tpu.memory_space<vmem>>, vector<1x1x128xf32>,
      %67 = vector.shape_cast %60 : vector<1x1xf32> to vector<1x1xf32>
      %68 = vector.broadcast %67 : vector<1x1xf32> to vector<1x128xf32>
      %c0_39 = arith.constant 0 : index
      %c0_40 = arith.constant 0 : index
      %c0_41 = arith.constant 0 : index
      %69 = vector.load %arg5[%c0_39, %c0_40, %c0_41] : memref<1x1x128xf32, #tpu.memory_space<vmem>>, vector<1x1x128xf32>
      %70 = vector.shape_cast %69 : vector<1x1x128xf32> to vector<1x128xf32>
      %71 = vector.shape_cast %68 : vector<1x128xf32> to vector<1x1x128xf32>
      tpu.vector_store %arg5[%c0_39, %c0_40, %c0_41], %71 {strides = array<i32>} : memref<1x1x128xf32, #tpu.memory_space<vmem>>, vector<1x1x128xf32>,
    } else {
    }
    return
  }
  func.func @transform_0(%arg0: i32, %arg1: i32) -> (i32, i32, i32) {
    %c0_i32 = arith.constant 0 : i32
    %c0_i32_0 = arith.constant 0 : i32
    return %arg0, %c0_i32, %arg1 : i32, i32, i32
  }
  func.func @transform_1(%arg0: i32, %arg1: i32) -> (i32, i32, i32) {
    %c0_i32 = arith.constant 0 : i32
    %c0_i32_0 = arith.constant 0 : i32
    return %arg0, %c0_i32, %arg1 : i32, i32, i32
  }
  func.func @transform_2(%arg0: i32, %arg1: i32) -> (i32, i32, i32) {
    %c0_i32 = arith.constant 0 : i32
    %c0_i32_0 = arith.constant 0 : i32
    %c0_i32_1 = arith.constant 0 : i32
    return %arg0, %c0_i32, %c0_i32_0 : i32, i32, i32
  }
  func.func @transform_3(%arg0: i32, %arg1: i32) -> (i32, i32, i32) {
    %c0_i32 = arith.constant 0 : i32
    %c0_i32_0 = arith.constant 0 : i32
    %c0_i32_1 = arith.constant 0 : i32
    return %arg0, %c0_i32, %c0_i32_0 : i32, i32, i32
  }
}

</mosaic_0001>

<llo_original>
// kernel: tpu_custom_call.1
$region0: #{tpu_custom_call.1}
  #allocation0 [shape = 'u32[]', space=smem, size = 0x4, offset = 0x4, fixed_abs, tag = 'smem constant byte address 0x4 - core index']
  #allocation1 [shape = 'u32[144,128]{1,0:T(1,128)}', space=vmem, size = 0x12000, scoped, tag = 'internal scratch']
  #allocation2 [shape = 'f32[1,1]{1,0:T(1,128)}', space=vmem, size = 0x200, scoped, tag = 'scratch operand']
  #allocation3 [shape = 'f32[4,1]{1,0:T(4,128)}', space=vmem, size = 0x800, scoped, tag = 'scratch operand']
  #allocation4 [shape = 'f32[4,1]{1,0:T(4,128)}', space=vmem, size = 0x800, scoped, tag = 'scratch operand']
  %s0 = inlined_call_operand.hbm [shape: f32[2,4,256], index: 0, kind: input, shape index: {}]
  %s1 = inlined_call_operand.hbm [shape: s32[2,1,256], index: 1, kind: input, shape index: {}]
  %s2 = inlined_call_operand.hbm [shape: f32[2,1,128], index: 2, kind: output, shape index: {0}]
  %s3 = inlined_call_operand.hbm [shape: f32[2,1,128], index: 3, kind: output, shape index: {1}]
  %4 = xla_tuple %s2, %s3
  %s5 = sld [smem:[#allocation0]]
  $region65: #{tpu_custom_call.1} parent=0
    _
  %s7 = ssub.s32 1, %s5
  %s8 = scalar_select 0, %s7, %s5
  $region1: #{tpu_custom_call.1} parent=0
    #allocation5 [shape = 'u8[8192]{0}', space=vmem, size = 0x2000, scoped, tag = 'input window, operand 0']
    #allocation6 [shape = 's32[2]{0}', space=sflag, size = 0x8, scoped, tag = 'scoped memory for tpu_custom_call.1']
    #allocation7 [shape = 's32[2]{0}', space=sflag, size = 0x8, scoped, tag = 'scoped memory for tpu_custom_call.1']
    #allocation8 [shape = 'u8[2048]{0}', space=vmem, size = 0x800, scoped, tag = 'input window, operand 1']
    #allocation9 [shape = 's32[2]{0}', space=sflag, size = 0x8, scoped, tag = 'scoped memory for tpu_custom_call.1']
    #allocation10 [shape = 'u8[1024]{0}', space=vmem, size = 0x400, scoped, tag = 'output window, operand 0']
    #allocation11 [shape = 'u8[1024]{0}', space=vmem, size = 0x400, scoped, tag = 'output window, operand 1']
    #allocation12 [shape = 's32[2]{0}', space=sflag, size = 0x8, scoped, tag = 'scoped memory for tpu_custom_call.1']
    %9 = vsyncpa [#allocation6], 0
    %s10 = scalar_lea.sflag [#allocation6], 1
    %11 = vsyncpa %s10, 0
    %12 = vsyncpa [#allocation9], 0
    %s13 = scalar_lea.sflag [#allocation9], 1
    %14 = vsyncpa %s13, 0
    %15 = vsyncpa [#allocation7], 0
    %s16 = scalar_lea.sflag [#allocation7], 1
    %17 = vsyncpa %s16, 0
    %18 = vsyncpa [#allocation12], 0
    %s19 = scalar_lea.sflag [#allocation12], 1
    %20 = vsyncpa %s19, 0
    loop: start=0, step=1, limit=4
    $region2: #{tpu_custom_call.1} parent=1 // loop_pre_header
      _
    $region3: #{tpu_custom_call.1} parent=1 // loop_header
      %s22 = sphi 0, %s26
      %p23 = scmp.ge.s32.totalorder %s22, 4
      %s29 = sphi 0, %s41
      %s30 = sphi 0, %s37
      %s31 = sphi 0, %s29
      %s32 = sphi 0, %s30
      %s33 = sphi 0, %s31
      %s34 = sphi 0, %s32
      %s46 = sphi 0, %s48
      %s49 = sphi 0, %s46
      %s50 = sphi 0, %s49
      %s66 = sphi 0, %s50
      %s74 = sphi 0, %s76
      %s77 = sphi 0, %s74
      %s78 = sphi 0, %s77
      %s94 = sphi 0, %s78
      %s100 = sphi 0, %s102
      %s103 = sphi 0, %s100
      %s104 = sphi 0, %s103
      %s120 = sphi 0, %s104
      %s126 = sphi 0, %s128
      %s129 = sphi 0, %s126
      %s130 = sphi 0, %s129
      %s146 = sphi 0, %s130
    $region4: #{tpu_custom_call.1} parent=1 // loop_header_branch
      %25 = sbr.rel (%p23) target = $region8
    $region5: #{tpu_custom_call.1} parent=1 // loop_body
      %s27 = ssub.s32 %s22, 1
      %s28 = ssub.s32 %s22, 2
      %s35 = sadd.s32 1, %s30
      %p36 = scmp.ge.s32.totalorder %s35, 1
      %s37 = scalar_select %p36, 0, %s35
      %s38 = sadd.s32 1, %s29
      %s39 = scalar_select %p36, %s38, %s29
      %p40 = scmp.ge.s32.totalorder %s39, 2
      %s41 = scalar_select %p40, 0, %s39
      %s42 = ssub.s32 %s29, %s41
      %s43 = ssub.s32 %s30, %s37
      %s44 = sor.u32 %s42, %s43
      %p45 = scmp.eq.s32.totalorder %s44, 0
      %s47 = sadd.s32 %s46, 1
      %s48 = scalar_select %p45, %s46, %s47
      %p51 = pneg %p45
      %p52 = scmp.eq.s32.totalorder %s22, 1
      %p53 = por %p51, %p52
      %p54 = scmp.ne.s32.totalorder %s46, %s49
      %p55 = scmp.eq.s32.totalorder %s22, 0
      %p56 = por %p54, %p55
      %p57 = scmp.ne.s32.totalorder %s46, %s49
      %p58 = scmp.eq.s32.totalorder %s27, 1
      %p59 = por %p57, %p58
      %p60 = scmp.ne.s32.totalorder %s49, %s50
      %p61 = scmp.eq.s32.totalorder %s27, 0
      %p62 = por %p60, %p61
      %p63 = scmp.ne.s32.totalorder %s49, %s50
      %p64 = scmp.eq.s32.totalorder %s28, 1
      %p65 = por %p63, %p64
      %p67 = scmp.ne.s32.totalorder %s50, %s66
      %p68 = scmp.eq.s32.totalorder %s28, 0
      %p69 = por %p67, %p68
      %s70 = ssub.s32 %s29, %s41
      %s71 = ssub.s32 %s30, %s37
      %s72 = sor.u32 %s70, %s71
      %p73 = scmp.eq.s32.totalorder %s72, 0
      %s75 = sadd.s32 %s74, 1
      %s76 = scalar_select %p73, %s74, %s75
      %p79 = pneg %p73
      %p80 = scmp.eq.s32.totalorder %s22, 1
      %p81 = por %p79, %p80
      %p82 = scmp.ne.s32.totalorder %s74, %s77
      %p83 = scmp.eq.s32.totalorder %s22, 0
      %p84 = por %p82, %p83
      %p85 = scmp.ne.s32.totalorder %s74, %s77
      %p86 = scmp.eq.s32.totalorder %s27, 1
      %p87 = por %p85, %p86
      %p88 = scmp.ne.s32.totalorder %s77, %s78
      %p89 = scmp.eq.s32.totalorder %s27, 0
      %p90 = por %p88, %p89
      %p91 = scmp.ne.s32.totalorder %s77, %s78
      %p92 = scmp.eq.s32.totalorder %s28, 1
      %p93 = por %p91, %p92
      %p95 = scmp.ne.s32.totalorder %s78, %s94
      %p96 = scmp.eq.s32.totalorder %s28, 0
      %p97 = por %p95, %p96
      %s98 = ssub.s32 %s29, %s41
      %p99 = scmp.eq.s32.totalorder %s98, 0
      %s101 = sadd.s32 %s100, 1
      %s102 = scalar_select %p99, %s100, %s101
      %p105 = pneg %p99
      %p106 = scmp.eq.s32.totalorder %s22, 1
      %p107 = por %p105, %p106
      %p108 = scmp.ne.s32.totalorder %s100, %s103
      %p109 = scmp.eq.s32.totalorder %s22, 0
      %p110 = por %p108, %p109
      %p111 = scmp.ne.s32.totalorder %s100, %s103
      %p112 = scmp.eq.s32.totalorder %s27, 1
      %p113 = por %p111, %p112
      %p114 = scmp.ne.s32.totalorder %s103, %s104
      %p115 = scmp.eq.s32.totalorder %s27, 0
      %p116 = por %p114, %p115
      %p117 = scmp.ne.s32.totalorder %s103, %s104
      %p118 = scmp.eq.s32.totalorder %s28, 1
      %p119 = por %p117, %p118
      %p121 = scmp.ne.s32.totalorder %s104, %s120
      %p122 = scmp.eq.s32.totalorder %s28, 0
      %p123 = por %p121, %p122
      %s124 = ssub.s32 %s29, %s41
      %p125 = scmp.eq.s32.totalorder %s124, 0
      %s127 = sadd.s32 %s126, 1
      %s128 = scalar_select %p125, %s126, %s127
      %p131 = pneg %p125
      %p132 = scmp.eq.s32.totalorder %s22, 1
      %p133 = por %p131, %p132
      %p134 = scmp.ne.s32.totalorder %s126, %s129
      %p135 = scmp.eq.s32.totalorder %s22, 0
      %p136 = por %p134, %p135
      %p137 = scmp.ne.s32.totalorder %s126, %s129
      %p138 = scmp.eq.s32.totalorder %s27, 1
      %p139 = por %p137, %p138
      %p140 = scmp.ne.s32.totalorder %s129, %s130
      %p141 = scmp.eq.s32.totalorder %s27, 0
      %p142 = por %p140, %p141
      %p143 = scmp.ne.s32.totalorder %s129, %s130
      %p144 = scmp.eq.s32.totalorder %s28, 1
      %p145 = por %p143, %p144
      %p147 = scmp.ne.s32.totalorder %s130, %s146
      %p148 = scmp.eq.s32.totalorder %s28, 0
      %p149 = por %p147, %p148
      %p150 = scmp.le.s32.totalorder 1, %s22
      %p151 = scmp.lt.s32.totalorder %s22, 3
      %p152 = pnand %p150, %p151
      %p153 = pneg %p152
      // Predicated region
      $region9: #{tpu_custom_call.1} parent=5 // pred_check
        _
      $region10: #{tpu_custom_call.1} parent=5 // pred_check_branch
        %155 = sbr.rel (%p152) target = $region12
      $region11: #{tpu_custom_call.1} parent=5 // pred_region
        %s156 = ssub.s32 %s22, 1
      $region12: #{tpu_custom_call.1} parent=5 // pred_fallthru
        _
      %p157 = scmp.lt.s32.totalorder %s22, 2
      // Predicated region
      $region13: #{tpu_custom_call.1} parent=5 // pred_check
        %p158 = pneg %p157
      $region14: #{tpu_custom_call.1} parent=5 // pred_check_branch
        %160 = sbr.rel (%p158) target = $region16
      $region15: #{tpu_custom_call.1} parent=5 // pred_region
        // Predicated region
        $region17: #{tpu_custom_call.1} parent=15 // pred_check
          %p161 = pneg %p56
        $region18: #{tpu_custom_call.1} parent=15 // pred_check_branch
          %163 = sbr.rel (%p161) target = $region20
        $region19: #{tpu_custom_call.1} parent=15 // pred_region
          %s164 = sand.u32 %s46, 1
          %s165 = scalar_lea.sflag [#allocation6], %s164
          %s166 = sand.u32 %s46, 1
          %s167 = smul.addr %s166, 8
          %s168 = scalar_lea.vmem [#allocation5], %s167
          %s169 = smul.u32 2, %s30
          %s171 = ssub.s32 128, 128
          %172 = vsyncadd %s165, %s171
          %s173 = smul.addr %s29, 2
          %s174 = sadd.s32 %s169, %s173
          %s175 = smul.addr %s174, 64
          %s176 = scalar_lea.hbm %s0, %s175
          %s178 = sshll.u32 %s168, 4
          %s179 = int_to_ptr.vmem [resolvable:$true] %s178
          %181 = dma.hbm_to_vmem [thread:$0]  %s176, 128, %s179, %s165
        $region20: #{tpu_custom_call.1} parent=15 // pred_fallthru
          _
        // Predicated region
        $region21: #{tpu_custom_call.1} parent=15 // pred_check
          %p182 = pneg %p84
        $region22: #{tpu_custom_call.1} parent=15 // pred_check_branch
          %184 = sbr.rel (%p182) target = $region24
        $region23: #{tpu_custom_call.1} parent=15 // pred_region
          %s185 = sand.u32 %s74, 1
          %s186 = scalar_lea.sflag [#allocation9], %s185
          %s187 = sand.u32 %s74, 1
          %s188 = smul.addr %s187, 2
          %s189 = scalar_lea.vmem [#allocation8], %s188
          %s190 = smul.u32 2, %s30
          %s192 = ssub.s32 32, 32
          %193 = vsyncadd %s186, %s192
          %s194 = smul.addr %s29, 2
          %s195 = sadd.s32 %s190, %s194
          %s196 = smul.addr %s195, 16
          %s197 = scalar_lea.hbm %s1, %s196
          %s199 = sshll.u32 %s189, 4
          %s200 = int_to_ptr.vmem [resolvable:$true] %s199
          %202 = dma.hbm_to_vmem [thread:$0]  %s197, 32, %s200, %s186
        $region24: #{tpu_custom_call.1} parent=15 // pred_fallthru
          _
      $region16: #{tpu_custom_call.1} parent=5 // pred_fallthru
        _
      %p203 = scmp.le.s32.totalorder 1, %s22
      %p204 = scmp.lt.s32.totalorder %s22, 3
      %p205 = pnand %p203, %p204
      %p206 = pneg %p205
      // Predicated region
      $region25: #{tpu_custom_call.1} parent=5 // pred_check
        _
      $region26: #{tpu_custom_call.1} parent=5 // pred_check_branch
        %208 = sbr.rel (%p205) target = $region28
      $region27: #{tpu_custom_call.1} parent=5 // pred_region
        %s209 = ssub.s32 %s22, 1
        %s210 = sand.u32 %s49, 1
        %s211 = scalar_lea.sflag [#allocation6], %s210
        %s212 = sand.u32 %s49, 1
        %s213 = smul.addr %s212, 8
        %s214 = scalar_lea.vmem [#allocation5], %s213
        // Predicated region
        $region29: #{tpu_custom_call.1} parent=27 // pred_check
          %p215 = pneg %p62
        $region30: #{tpu_custom_call.1} parent=27 // pred_check_branch
          %217 = sbr.rel (%p215) target = $region32
        $region31: #{tpu_custom_call.1} parent=27 // pred_region
          %218 = dma.done %s211, 128
        $region32: #{tpu_custom_call.1} parent=27 // pred_fallthru
          _
        %s219 = sand.u32 %s77, 1
        %s220 = scalar_lea.sflag [#allocation9], %s219
        %s221 = sand.u32 %s77, 1
        %s222 = smul.addr %s221, 2
        %s223 = scalar_lea.vmem [#allocation8], %s222
        // Predicated region
        $region33: #{tpu_custom_call.1} parent=27 // pred_check
          %p224 = pneg %p90
        $region34: #{tpu_custom_call.1} parent=27 // pred_check_branch
          %226 = sbr.rel (%p224) target = $region36
        $region35: #{tpu_custom_call.1} parent=27 // pred_region
          %227 = dma.done %s220, 32
        $region36: #{tpu_custom_call.1} parent=27 // pred_fallthru
          _
        %s228 = sand.u32 %s49, 1
        %s229 = scalar_lea.sflag [#allocation6], %s228
        %s230 = sand.u32 %s49, 1
        %s231 = smul.addr %s230, 8
        %s232 = scalar_lea.vmem [#allocation5], %s231
        %p233 = pneg %p62
        %p234 = pneg %p59
        %s235 = sand.u32 %s77, 1
        %s236 = scalar_lea.sflag [#allocation9], %s235
        %s237 = sand.u32 %s77, 1
        %s238 = smul.addr %s237, 2
        %s239 = scalar_lea.vmem [#allocation8], %s238
        %p240 = pneg %p90
        %p241 = pneg %p87
        %p242 = pneg %p116
        %p243 = pneg %p113
        %s244 = sand.u32 %s103, 1
        %s245 = scalar_lea.sflag [#allocation7], %s244
        %s246 = sand.u32 %s103, 1
        %s247 = scalar_lea.vmem [#allocation10], %s246
        %p248 = pneg %p142
        %p249 = pneg %p139
        %s250 = sand.u32 %s129, 1
        %s251 = scalar_lea.sflag [#allocation12], %s250
        %s252 = sand.u32 %s129, 1
        %s253 = scalar_lea.vmem [#allocation11], %s252
        %s254 = smul.u32 2, %s32
        %s255 = smul.u32 2, %s32
        %p256 = scmp.eq.s32.totalorder %s32, 0
        // Predicated region
        $region37: #{tpu_custom_call.1} parent=27 // pred_check
          %p257 = pneg %p256
        $region38: #{tpu_custom_call.1} parent=27 // pred_check_branch
          %259 = sbr.rel (%p257) target = $region40
        $region39: #{tpu_custom_call.1} parent=27 // pred_region
          %vm260 = vcmask 0
          %261 = vst.msk [vmem:[#allocation2] sm:$0x1] %vm260, 0.0
          %vm262 = vcmask 3072
          %263 = vst.msk [vmem:[#allocation3] sm:$0xf] %vm262, 0.0
          %264 = vst.msk [vmem:[#allocation4] sm:$0xf] %vm262, 0.0
        $region40: #{tpu_custom_call.1} parent=27 // pred_fallthru
          _
        %v265 = vld [vmem:[%s214] sm:$0xff]
        %v266 = vld [vmem:[%s223] sm:$0x3]
        %v267 = vlaneseq
        %v268 = vshrl.u32 %v267, 7
        %v269 = vlaneseq
        %v270 = vshrl.u32 %v269, 7
        %v271 = vsub.s32 0, %v270
        %v272 = vrot.slane %v266, %v271
        %v273 = vlaneseq
        %v274 = vshrl.u32 %v273, 7
        %v275 = vsub.s32 1, %v274
        %v276 = vrot.slane %v266, %v275
        %vm277 = vcmp.eq.s32.totalorder %v272, %v268
        %vm278 = vcmp.eq.s32.totalorder %v276, %v268
        %v279 = vmul.f32 %v265, 1.442695
        %v280 = vpow.pop %v279
        %v281 = vld [vmem:[#allocation2] sm:$0x1]
        %v283 = vcombine.high %v265, %v265
        %v285 = vsel %vm277, %v265, 0.0
        %v286 = vsel %vm278, %v283, 0.0
        %vm287 = vcmask 1043456
        %v288 = vsel %vm287, %v285, 0.0
        %v289 = vsel %vm287, %v286, 0.0
        %v290 = vadd.f32 %v288, %v289
        %291 = vadd.xlane.f32.xlu0 %v290
        %v292 = vpop.xlane.xlu0 %291
        %v293 = vrot.slane %v292, 4
        %v294 = vadd.f32 %v292, %v293
        %v295 = vrot.slane %v294, 2
        %v296 = vadd.f32 %v294, %v295
        %v297 = vrot.slane %v296, 1
        %v298 = vadd.f32 %v296, %v297
        %s299 = vtos %v298
        %v300 = vstv %s299
        %v301 = vadd.f32 %v281, %v300
        %vm302 = vcmask 0
        %303 = vst.msk [vmem:[#allocation2] sm:$0x1] %vm302, %v301
        %v304 = vld [vmem:[#allocation3] sm:$0xf]
        %v306 = vcombine.high %v280, %v280
        %v308 = vsel %vm277, %v280, 0.0
        %v309 = vsel %vm278, %v306, 0.0
        %v310 = vsel %vm287, %v308, 0.0
        %v311 = vsel %vm287, %v309, 0.0
        %v312 = vadd.f32 %v310, %v311
        %313 = vadd.xlane.f32.xlu0 %v312
        %v314 = vpop.xlane.xlu0 %313
        %v315 = vadd.f32 %v304, %v314
        %vm316 = vcmask 3072
        %317 = vst.msk [vmem:[#allocation3] sm:$0xf] %vm316, %v315
        %v318 = vld [vmem:[#allocation4] sm:$0xf]
        %v319 = vsel %vm277, 1, 0
        %v320 = vsel %vm278, 1, 0
        %v321 = vcvt.s32.f32 %v319
        %v322 = vcvt.s32.f32 %v320
        %v323 = vsel %vm287, %v321, 0.0
        %v324 = vsel %vm287, %v322, 0.0
        %v325 = vadd.f32 %v323, %v324
        %326 = vadd.xlane.f32.xlu0 %v325
        %v327 = vpop.xlane.xlu0 %326
        %v328 = vsel %vm287, %v280, 0.0
        %v329 = vsel %vm287, %v306, 0.0
        %v330 = vadd.f32 %v328, %v329
        %331 = vadd.xlane.f32.xlu0 %v330
        %v332 = vpop.xlane.xlu0 %331
        %v333 = vadd.f32 %v327, %v332
        %v334 = vadd.f32 %v318, %v333
        %335 = vst.msk [vmem:[#allocation4] sm:$0xf] %vm316, %v334
        // Predicated region
        $region41: #{tpu_custom_call.1} parent=27 // pred_check
          %p336 = pneg %p256
        $region42: #{tpu_custom_call.1} parent=27 // pred_check_branch
          %338 = sbr.rel (%p336) target = $region44
        $region43: #{tpu_custom_call.1} parent=27 // pred_region
          %v339 = vld [vmem:[#allocation3] sm:$0xf]
          %v340 = vmul.f32 %v339, 2.0
          %v341 = vadd.f32 %v340, 1e-05
          %v342 = vld [vmem:[#allocation4] sm:$0xf]
          %v343 = vadd.f32 %v342, 1e-05
          %v344 = vrcp.pop %v343
          %v345 = vmul.f32 %v341, %v344
          %vm346 = vcmp.ge.s32.totalorder %v268, 1
          %v347 = vsel %vm346, %v345, 0.0
          %v348 = vsel %vm316, %v347, 0.0
          %349 = vadd.xlane.f32.xlu0 %v348
          %v350 = vpop.xlane.xlu0 %349
          %v351 = vrot.slane %v350, 4
          %v352 = vadd.f32 %v350, %v351
          %v353 = vrot.slane %v352, 2
          %v354 = vadd.f32 %v352, %v353
          %v355 = vrot.slane %v354, 1
          %v356 = vadd.f32 %v354, %v355
          %s357 = vtos %v356
          %v358 = vld [vmem:[#allocation2] sm:$0x1]
          %360 = vset.pattern.permute.xlu0 0
          %361 = vperm.xlu0 %360, %v358
          %v362 = vpop.permute.xlu0 %361
          %v364 = vlaneseq
          %v365 = vshrl.u32 %v364, 7
          %v366 = vsub.s32 0, %v365
          %v367 = vrot.slane %v362, %v366
          %368 = vst [vmem:[%s247] sm:$0x1] %v367
          %v369 = vstv %s357
          %370 = vst [vmem:[%s253] sm:$0x1] %v369
        $region44: #{tpu_custom_call.1} parent=27 // pred_fallthru
          _
        %s371 = sand.u32 %s103, 1
        %s372 = scalar_lea.sflag [#allocation7], %s371
        %s373 = sand.u32 %s103, 1
        %s374 = scalar_lea.vmem [#allocation10], %s373
        %s375 = sand.u32 %s129, 1
        %s376 = scalar_lea.sflag [#allocation12], %s375
        %s377 = sand.u32 %s129, 1
        %s378 = scalar_lea.vmem [#allocation11], %s377
        // Predicated region
        $region45: #{tpu_custom_call.1} parent=27 // pred_check
          %p379 = pneg %p113
        $region46: #{tpu_custom_call.1} parent=27 // pred_check_branch
          %381 = sbr.rel (%p379) target = $region48
        $region47: #{tpu_custom_call.1} parent=27 // pred_region
          %s383 = ssub.s32 16, 16
          %384 = vsyncadd %s372, %s383
          %s385 = smul.addr %s31, 16
          %s386 = scalar_lea.hbm %s2, %s385
          %s388 = sshll.u32 %s374, 4
          %s389 = int_to_ptr.vmem [resolvable:$true] %s388
          %391 = dma.vmem_to_hbm [thread:$0]  %s389, 16, %s386, %s372
        $region48: #{tpu_custom_call.1} parent=27 // pred_fallthru
          _
        // Predicated region
        $region49: #{tpu_custom_call.1} parent=27 // pred_check
          %p392 = pneg %p139
        $region50: #{tpu_custom_call.1} parent=27 // pred_check_branch
          %394 = sbr.rel (%p392) target = $region52
        $region51: #{tpu_custom_call.1} parent=27 // pred_region
          %s396 = ssub.s32 16, 16
          %397 = vsyncadd %s376, %s396
          %s398 = smul.addr %s31, 16
          %s399 = scalar_lea.hbm %s3, %s398
          %s401 = sshll.u32 %s378, 4
          %s402 = int_to_ptr.vmem [resolvable:$true] %s401
          %404 = dma.vmem_to_hbm [thread:$0]  %s402, 16, %s399, %s376
        $region52: #{tpu_custom_call.1} parent=27 // pred_fallthru
          _
      $region28: #{tpu_custom_call.1} parent=5 // pred_fallthru
        _
      %p405 = scmp.le.s32.totalorder 2, %s22
      // Predicated region
      $region53: #{tpu_custom_call.1} parent=5 // pred_check
        %p406 = pneg %p405
      $region54: #{tpu_custom_call.1} parent=5 // pred_check_branch
        %408 = sbr.rel (%p406) target = $region56
      $region55: #{tpu_custom_call.1} parent=5 // pred_region
        %s409 = ssub.s32 %s22, 2
        // Predicated region
        $region57: #{tpu_custom_call.1} parent=55 // pred_check
          %p410 = pneg %p119
        $region58: #{tpu_custom_call.1} parent=55 // pred_check_branch
          %412 = sbr.rel (%p410) target = $region60
        $region59: #{tpu_custom_call.1} parent=55 // pred_region
          %s413 = sand.u32 %s104, 1
          %s414 = scalar_lea.sflag [#allocation7], %s413
          %s415 = sand.u32 %s104, 1
          %s416 = scalar_lea.vmem [#allocation10], %s415
          %417 = dma.done %s414, 16
        $region60: #{tpu_custom_call.1} parent=55 // pred_fallthru
          _
        // Predicated region
        $region61: #{tpu_custom_call.1} parent=55 // pred_check
          %p418 = pneg %p145
        $region62: #{tpu_custom_call.1} parent=55 // pred_check_branch
          %420 = sbr.rel (%p418) target = $region64
        $region63: #{tpu_custom_call.1} parent=55 // pred_region
          %s421 = sand.u32 %s130, 1
          %s422 = scalar_lea.sflag [#allocation12], %s421
          %s423 = sand.u32 %s130, 1
          %s424 = scalar_lea.vmem [#allocation11], %s423
          %425 = dma.done %s422, 16
        $region64: #{tpu_custom_call.1} parent=55 // pred_fallthru
          _
      $region56: #{tpu_custom_call.1} parent=5 // pred_fallthru
        _
    $region6: #{tpu_custom_call.1} parent=1 // loop_footer
      %s26 = sadd.s32 1, %s22
    $region7: #{tpu_custom_call.1} parent=1 // loop_footer_branch
      %21 = sbr.rel target = $region3
    $region8: #{tpu_custom_call.1} parent=1 // loop_exit
      _
    %426 = vsyncpa [#allocation6], 1
    %s427 = scalar_lea.sflag [#allocation6], 1
    %428 = vsyncpa %s427, 1
    %429 = vsyncpa [#allocation9], 1
    %s430 = scalar_lea.sflag [#allocation9], 1
    %431 = vsyncpa %s430, 1
    %432 = vsyncpa [#allocation7], 1
    %s433 = scalar_lea.sflag [#allocation7], 1
    %434 = vsyncpa %s433, 1
    %435 = vsyncpa [#allocation12], 1
    %s436 = scalar_lea.sflag [#allocation12], 1
    %437 = vsyncpa %s436, 1

</llo_original>
